<compile_context>
chip_gen: v6e
topology: v6e:2x2x1
jax: 0.10.0
libtpu: 0.0.40
codegen_flags: <defaults>
</compile_context>

<pallas_src>
import functools

import jax
import jax.numpy as jnp
from jax.experimental import pallas as pl
from jax.experimental.pallas import tpu as pltpu


def _round_up(x, m):
    return (x + m - 1) // m * m


def _rnn_recurrence_kernel(xp_ref, whh_ref, out_ref, h_ref, *,
                           seq_len, time_chunk, compute_dtype):
    """One grid step = `time_chunk` timesteps of the recurrence.

    xp_ref : [Tc, B, Hp] f32            precomputed x_t @ W_ih^T + (b_ih + b_hh), time-major
    whh_ref: [Hp, Hp]    compute_dtype  W_hh^T, resident in VMEM across the whole grid
    out_ref: [B, Hp]     f32            final hidden state (written on the last chunk only)
    h_ref  : [B, Hp]     f32            VMEM scratch carrying the hidden state across chunks
    """
    t = pl.program_id(0)

    @pl.when(t == 0)
    def _():
        h_ref[...] = jnp.zeros_like(h_ref)          # h_0 = 0

    whh = whh_ref[...]                              # [Hp, Hp]
    h = h_ref[...]                                  # [B, Hp] f32 carry

    tail_masking = (seq_len % time_chunk) != 0      # Python bool, resolved at trace time

    # Statically-unrolled recurrence over the chunk: per step only a small
    # [B, Hp] @ [Hp, Hp] matmul + bias-free add + f32 tanh sit on the serial path.
    for s in range(time_chunk):
        pre = xp_ref[s] + jnp.dot(h.astype(compute_dtype), whh,
                                  preferred_element_type=jnp.float32)
        h_new = jnp.tanh(pre)                       # f32 activation (v5e-safe)
        if tail_masking:
            # Zero-padded tail timesteps must not advance the recurrence.
            h = jnp.where(t * time_chunk + s < seq_len, h_new, h)
        else:
            h = h_new

    h_ref[...] = h

    @pl.when(t == pl.num_programs(0) - 1)
    def _():
        out_ref[...] = h.astype(out_ref.dtype)      # == out[:, -1, :]


def rnn_temporal_forward(x_seq, w_ih, w_hh, b_ih, b_hh, *, time_chunk=64,
                         compute_dtype=None):
    """
    x_seq : [B, S, I]  (batch_first, as in the PyTorch module)
    w_ih  : [H, I], w_hh : [H, H], b_ih / b_hh : [H]   (torch.nn.RNN parameter shapes)
    returns [B, H]  == rnn(x_seq)[0][:, -1, :]
    """
    B, S, I = x_seq.shape
    H = w_ih.shape[0]

    if compute_dtype is None:
        # bf16 MXU operands only on a real TPU backend; f32 elsewhere (CPU/interpret
        # dot executors reject BF16 x BF16 = F32).
        compute_dtype = jnp.bfloat16 if jax.default_backend() == "tpu" else jnp.float32

    Hp = _round_up(H, 128)                  # lane-dense hidden width
    Tc = min(S, time_chunk)                 # timesteps per grid step (chunk)
    num_chunks = -(-S // Tc)
    Sp = num_chunks * Tc

    # ---- parameter prep: zero-pad H -> Hp, compute-dtype MXU operands, combined f32 bias ----
    wih_t = jnp.zeros((I, Hp), compute_dtype).at[:, :H].set(
        jnp.transpose(w_ih).astype(compute_dtype))                       # [I, Hp]
    whh_t = jnp.zeros((Hp, Hp), compute_dtype).at[:H, :H].set(
        jnp.transpose(w_hh).astype(compute_dtype))                       # [Hp, Hp]
    bias = jnp.zeros((Hp,), jnp.float32).at[:H].set(
        (b_ih + b_hh).astype(jnp.float32))                               # [Hp]

    # ---- hoisted input projection: one big, fully-parallel matmul (f32 accumulate).
    # 'bsi,ih->sbh' also fuses the batch_first -> time-major layout change, so no
    # standalone transposed copy of x ever hits HBM.
    xp = jnp.einsum('bsi,ih->sbh', x_seq.astype(compute_dtype), wih_t,
                    preferred_element_type=jnp.float32) + bias           # [S, B, Hp]
    if Sp != S:
        xp = jnp.pad(xp, ((0, Sp - S), (0, 0), (0, 0)))

    kernel = functools.partial(_rnn_recurrence_kernel, seq_len=S, time_chunk=Tc,
                               compute_dtype=compute_dtype)

    out = pl.pallas_call(
        kernel,
        out_shape=jax.ShapeDtypeStruct((B, Hp), jnp.float32),
        grid_spec=pltpu.PrefetchScalarGridSpec(
            num_scalar_prefetch=0,
            grid=(num_chunks,),
            in_specs=[
                pl.BlockSpec((Tc, B, Hp), lambda t: (t, 0, 0)),   # streamed xp chunk
                pl.BlockSpec((Hp, Hp), lambda t: (0, 0)),         # W_hh^T, resident
            ],
            out_specs=pl.BlockSpec((B, Hp), lambda t: (0, 0)),    # lane-dense (Hp % 128 == 0)
            scratch_shapes=[pltpu.VMEM((B, Hp), jnp.float32)],    # hidden-state carry
        ),
        compiler_params=pltpu.CompilerParams(
            dimension_semantics=("arbitrary",),                   # sequential recurrence
        ),
    )(xp, whh_t)

    # TODO(synk): for large B on v7x (2 TensorCores) add a leading "parallel" batch grid
    # axis (each core runs an independent batch slice); for very large H keep W_hh in
    # pl.ANY and copy it once into VMEM scratch to avoid pipeline double-buffering.
    return out[:, :H]


def _rnn_reference(x_seq, w_ih, w_hh, b_ih, b_hh, *, operand_dtype=jnp.float32):
    """Pure-JAX reference.  operand_dtype=bf16 mimics the kernel's bf16-operand /
    f32-accumulate precision; f32 is the plain torch.nn.RNN math."""
    B, S, I = x_seq.shape
    H = w_ih.shape[0]
    rnd = lambda a: a.astype(operand_dtype).astype(jnp.float32)
    x = rnd(x_seq.astype(jnp.float32))
    wih = rnd(w_ih.astype(jnp.float32))
    whh = rnd(w_hh.astype(jnp.float32))
    bias = (b_ih + b_hh).astype(jnp.float32)
    h = jnp.zeros((B, H), jnp.float32)
    for t in range(S):
        h = jnp.tanh(x[:, t, :] @ wih.T + bias + rnd(h) @ whh.T)
    return h


if __name__ == "__main__":
    # Small shapes consistent with the module's forward: [batch, seq, input_size].
    B, S, I, H = 2, 8, 16, 32

    key = jax.random.PRNGKey(0)
    k_x, k_wih, k_whh, k_bih, k_bhh = jax.random.split(key, 5)

    # PyTorch-style uniform(-1/sqrt(H), 1/sqrt(H)) parameter init.
    bound = 1.0 / jnp.sqrt(jnp.float32(H))
    x_seq = jax.random.normal(k_x, (B, S, I), jnp.float32)
    w_ih = jax.random.uniform(k_wih, (H, I), jnp.float32, -bound, bound)
    w_hh = jax.random.uniform(k_whh, (H, H), jnp.float32, -bound, bound)
    b_ih = jax.random.uniform(k_bih, (H,), jnp.float32, -bound, bound)
    b_hh = jax.random.uniform(k_bhh, (H,), jnp.float32, -bound, bound)

    out = jax.block_until_ready(rnn_temporal_forward(x_seq, w_ih, w_hh, b_ih, b_hh))
    assert out.shape == (B, H), out.shape

    on_tpu = jax.default_backend() == "tpu"
    if on_tpu:
        # Tight check vs a reference using the same operand rounding (bf16 in, f32 acc).
        ref_mixed = _rnn_reference(x_seq, w_ih, w_hh, b_ih, b_hh,
                                   operand_dtype=jnp.bfloat16)
        assert jnp.allclose(out, ref_mixed, atol=1e-4, rtol=1e-3), \
            "mismatch vs mixed-precision reference"
        # Loose sanity check vs the pure-f32 torch semantics.
        ref_f32 = _rnn_reference(x_seq, w_ih, w_hh, b_ih, b_hh)
        assert jnp.allclose(out, ref_f32, atol=5e-2, rtol=5e-2), \
            "mismatch vs f32 reference"
    else:
        # Pure f32 path: tight check vs the torch.nn.RNN math.
        ref_f32 = _rnn_reference(x_seq, w_ih, w_hh, b_ih, b_hh)
        assert jnp.allclose(out, ref_f32, atol=1e-4, rtol=1e-4), \
            "mismatch vs f32 reference"

    print("KERNEL_OK")
</pallas_src>

<mosaic_0001>
module attributes {stable_mosaic.version = 11 : i64} {
  func.func @_rnn_recurrence_kernel(%arg0: i32, %arg1: memref<8x2x128xf32, #tpu.memory_space<vmem>>, %arg2: memref<128x128xf32, #tpu.memory_space<vmem>>, %arg3: memref<2x128xf32, #tpu.memory_space<vmem>>, %arg4: memref<2x128xf32, #tpu.memory_space<vmem>>) attributes {dimension_semantics = [#tpu.dimension_semantics<arbitrary>], iteration_bounds = array<i64: 1>, scalar_prefetch = 0 : i64, scratch_operands = 1 : i64, tpu.core_type = #tpu.core_type<tc>, window_params = [{transform_indices = @transform_0, window_bounds = array<i64: 8, 2, 128>}, {pipeline_mode = #tpu.pipeline_mode<synchronous>, transform_indices = @transform_1, window_bounds = array<i64: 128, 128>}, {pipeline_mode = #tpu.pipeline_mode<synchronous>, transform_indices = @transform_2, window_bounds = array<i64: 2, 128>}]} {
    %c0_i32 = arith.constant 0 : i32
    %0 = arith.cmpi eq, %arg0, %c0_i32 : i32
    %1 = arith.extui %0 : i1 to i32
    %c0_i32_0 = arith.constant 0 : i32
    %2 = arith.cmpi ne, %1, %c0_i32_0 : i32
    scf.if %2 {
      %cst_32 = arith.constant 0.000000e+00 : f32
      %49 = vector.broadcast %cst_32 : f32 to vector<2x128xf32>
      %c0_33 = arith.constant 0 : index
      %c0_34 = arith.constant 0 : index
      %50 = vector.load %arg4[%c0_33, %c0_34] : memref<2x128xf32, #tpu.memory_space<vmem>>, vector<2x128xf32>
      tpu.vector_store %arg4[%c0_33, %c0_34], %49 {strides = array<i32>} : memref<2x128xf32, #tpu.memory_space<vmem>>, vector<2x128xf32>,
    } else {
    }
    %c0 = arith.constant 0 : index
    %c0_1 = arith.constant 0 : index
    %3 = vector.load %arg2[%c0, %c0_1] : memref<128x128xf32, #tpu.memory_space<vmem>>, vector<128x128xf32>
    %c0_2 = arith.constant 0 : index
    %c0_3 = arith.constant 0 : index
    %4 = vector.load %arg4[%c0_2, %c0_3] : memref<2x128xf32, #tpu.memory_space<vmem>>, vector<2x128xf32>
    %c0_4 = arith.constant 0 : index
    %c0_5 = arith.constant 0 : index
    %c0_6 = arith.constant 0 : index
    %5 = vector.load %arg1[%c0_4, %c0_5, %c0_6] : memref<8x2x128xf32, #tpu.memory_space<vmem>>, vector<1x2x128xf32>
    %6 = vector.shape_cast %5 : vector<1x2x128xf32> to vector<2x128xf32>
    %cst = arith.constant dense<0.000000e+00> : vector<2x128xf32>
    %7 = tpu.matmul %4, %3, %cst {dimension_numbers = #tpu.dot_dimension_numbers<[1], [0], [0], [1], [0, 0, 1, 1], [], []>} : vector<2x128xf32>, vector<128x128xf32>, vector<2x128xf32> -> vector<2x128xf32>
    %8 = arith.addf %6, %7 : vector<2x128xf32>
    %9 = math.tanh %8 : vector<2x128xf32>
    %c1 = arith.constant 1 : index
    %c0_7 = arith.constant 0 : index
    %c0_8 = arith.constant 0 : index
    %10 = vector.load %arg1[%c1, %c0_7, %c0_8] : memref<8x2x128xf32, #tpu.memory_space<vmem>>, vector<1x2x128xf32>
    %11 = vector.shape_cast %10 : vector<1x2x128xf32> to vector<2x128xf32>
    %cst_9 = arith.constant dense<0.000000e+00> : vector<2x128xf32>
    %12 = tpu.matmul %9, %3, %cst_9 {dimension_numbers = #tpu.dot_dimension_numbers<[1], [0], [0], [1], [0, 0, 1, 1], [], []>} : vector<2x128xf32>, vector<128x128xf32>, vector<2x128xf32> -> vector<2x128xf32>
    %13 = arith.addf %11, %12 : vector<2x128xf32>
    %14 = math.tanh %13 : vector<2x128xf32>
    %c2 = arith.constant 2 : index
    %c0_10 = arith.constant 0 : index
    %c0_11 = arith.constant 0 : index
    %15 = vector.load %arg1[%c2, %c0_10, %c0_11] : memref<8x2x128xf32, #tpu.memory_space<vmem>>, vector<1x2x128xf32>
    %16 = vector.shape_cast %15 : vector<1x2x128xf32> to vector<2x128xf32>
    %cst_12 = arith.constant dense<0.000000e+00> : vector<2x128xf32>
    %17 = tpu.matmul %14, %3, %cst_12 {dimension_numbers = #tpu.dot_dimension_numbers<[1], [0], [0], [1], [0, 0, 1, 1], [], []>} : vector<2x128xf32>, vector<128x128xf32>, vector<2x128xf32> -> vector<2x128xf32>
    %18 = arith.addf %16, %17 : vector<2x128xf32>
    %19 = math.tanh %18 : vector<2x128xf32>
    %c3 = arith.constant 3 : index
    %c0_13 = arith.constant 0 : index
    %c0_14 = arith.constant 0 : index
    %20 = vector.load %arg1[%c3, %c0_13, %c0_14] : memref<8x2x128xf32, #tpu.memory_space<vmem>>, vector<1x2x128xf32>
    %21 = vector.shape_cast %20 : vector<1x2x128xf32> to vector<2x128xf32>
    %cst_15 = arith.constant dense<0.000000e+00> : vector<2x128xf32>
    %22 = tpu.matmul %19, %3, %cst_15 {dimension_numbers = #tpu.dot_dimension_numbers<[1], [0], [0], [1], [0, 0, 1, 1], [], []>} : vector<2x128xf32>, vector<128x128xf32>, vector<2x128xf32> -> vector<2x128xf32>
    %23 = arith.addf %21, %22 : vector<2x128xf32>
    %24 = math.tanh %23 : vector<2x128xf32>
    %c4 = arith.constant 4 : index
    %c0_16 = arith.constant 0 : index
    %c0_17 = arith.constant 0 : index
    %25 = vector.load %arg1[%c4, %c0_16, %c0_17] : memref<8x2x128xf32, #tpu.memory_space<vmem>>, vector<1x2x128xf32>
    %26 = vector.shape_cast %25 : vector<1x2x128xf32> to vector<2x128xf32>
    %cst_18 = arith.constant dense<0.000000e+00> : vector<2x128xf32>
    %27 = tpu.matmul %24, %3, %cst_18 {dimension_numbers = #tpu.dot_dimension_numbers<[1], [0], [0], [1], [0, 0, 1, 1], [], []>} : vector<2x128xf32>, vector<128x128xf32>, vector<2x128xf32> -> vector<2x128xf32>
    %28 = arith.addf %26, %27 : vector<2x128xf32>
    %29 = math.tanh %28 : vector<2x128xf32>
    %c5 = arith.constant 5 : index
    %c0_19 = arith.constant 0 : index
    %c0_20 = arith.constant 0 : index
    %30 = vector.load %arg1[%c5, %c0_19, %c0_20] : memref<8x2x128xf32, #tpu.memory_space<vmem>>, vector<1x2x128xf32>
    %31 = vector.shape_cast %30 : vector<1x2x128xf32> to vector<2x128xf32>
    %cst_21 = arith.constant dense<0.000000e+00> : vector<2x128xf32>
    %32 = tpu.matmul %29, %3, %cst_21 {dimension_numbers = #tpu.dot_dimension_numbers<[1], [0], [0], [1], [0, 0, 1, 1], [], []>} : vector<2x128xf32>, vector<128x128xf32>, vector<2x128xf32> -> vector<2x128xf32>
    %33 = arith.addf %31, %32 : vector<2x128xf32>
    %34 = math.tanh %33 : vector<2x128xf32>
    %c6 = arith.constant 6 : index
    %c0_22 = arith.constant 0 : index
    %c0_23 = arith.constant 0 : index
    %35 = vector.load %arg1[%c6, %c0_22, %c0_23] : memref<8x2x128xf32, #tpu.memory_space<vmem>>, vector<1x2x128xf32>
    %36 = vector.shape_cast %35 : vector<1x2x128xf32> to vector<2x128xf32>
    %cst_24 = arith.constant dense<0.000000e+00> : vector<2x128xf32>
    %37 = tpu.matmul %34, %3, %cst_24 {dimension_numbers = #tpu.dot_dimension_numbers<[1], [0], [0], [1], [0, 0, 1, 1], [], []>} : vector<2x128xf32>, vector<128x128xf32>, vector<2x128xf32> -> vector<2x128xf32>
    %38 = arith.addf %36, %37 : vector<2x128xf32>
    %39 = math.tanh %38 : vector<2x128xf32>
    %c7 = arith.constant 7 : index
    %c0_25 = arith.constant 0 : index
    %c0_26 = arith.constant 0 : index
    %40 = vector.load %arg1[%c7, %c0_25, %c0_26] : memref<8x2x128xf32, #tpu.memory_space<vmem>>, vector<1x2x128xf32>
    %41 = vector.shape_cast %40 : vector<1x2x128xf32> to vector<2x128xf32>
    %cst_27 = arith.constant dense<0.000000e+00> : vector<2x128xf32>
    %42 = tpu.matmul %39, %3, %cst_27 {dimension_numbers = #tpu.dot_dimension_numbers<[1], [0], [0], [1], [0, 0, 1, 1], [], []>} : vector<2x128xf32>, vector<128x128xf32>, vector<2x128xf32> -> vector<2x128xf32>
    %43 = arith.addf %41, %42 : vector<2x128xf32>
    %44 = math.tanh %43 : vector<2x128xf32>
    %c0_28 = arith.constant 0 : index
    %c0_29 = arith.constant 0 : index
    %45 = vector.load %arg4[%c0_28, %c0_29] : memref<2x128xf32, #tpu.memory_space<vmem>>, vector<2x128xf32>
    tpu.vector_store %arg4[%c0_28, %c0_29], %44 {strides = array<i32>} : memref<2x128xf32, #tpu.memory_space<vmem>>, vector<2x128xf32>,
    %c0_i32_30 = arith.constant 0 : i32
    %46 = arith.cmpi eq, %arg0, %c0_i32_30 : i32
    %47 = arith.extui %46 : i1 to i32
    %c0_i32_31 = arith.constant 0 : i32
    %48 = arith.cmpi ne, %47, %c0_i32_31 : i32
    scf.if %48 {
      %c0_32 = arith.constant 0 : index
      %c0_33 = arith.constant 0 : index
      %49 = vector.load %arg3[%c0_32, %c0_33] : memref<2x128xf32, #tpu.memory_space<vmem>>, vector<2x128xf32>
      tpu.vector_store %arg3[%c0_32, %c0_33], %44 {strides = array<i32>} : memref<2x128xf32, #tpu.memory_space<vmem>>, vector<2x128xf32>,
    } else {
    }
    return
  }
  func.func @transform_0(%arg0: i32) -> (i32, i32, i32) {
    %c0_i32 = arith.constant 0 : i32
    %c0_i32_0 = arith.constant 0 : i32
    %c0_i32_1 = arith.constant 0 : i32
    return %arg0, %c0_i32, %c0_i32_0 : i32, i32, i32
  }
  func.func @transform_1(%arg0: i32) -> (i32, i32) {
    %c0_i32 = arith.constant 0 : i32
    %c0_i32_0 = arith.constant 0 : i32
    %c0_i32_1 = arith.constant 0 : i32
    return %c0_i32, %c0_i32_0 : i32, i32
  }
  func.func @transform_2(%arg0: i32) -> (i32, i32) {
    %c0_i32 = arith.constant 0 : i32
    %c0_i32_0 = arith.constant 0 : i32
    %c0_i32_1 = arith.constant 0 : i32
    return %c0_i32, %c0_i32_0 : i32, i32
  }
}

</mosaic_0001>

<llo_original>
// kernel: tpu_custom_call.1
$region0: #{tpu_custom_call.1}
  #allocation0 [shape = 'u32[]', space=smem, size = 0x4, offset = 0x4, fixed_abs, tag = 'smem constant byte address 0x4 - core index']
  #allocation1 [shape = 'u32[144,128]{1,0:T(1,128)}', space=vmem, size = 0x12000, scoped, tag = 'internal scratch']
  #allocation2 [shape = 'f32[2,128]{1,0:T(2,128)}', space=vmem, size = 0x400, scoped, tag = 'scratch operand']
  %s0 = inlined_call_operand.hbm [shape: f32[8,2,128], index: 0, kind: input, shape index: {}]
  %s1 = inlined_call_operand.hbm [shape: f32[128,128], index: 1, kind: input, shape index: {}]
  %s2 = inlined_call_operand.hbm [shape: f32[2,128], index: 2, kind: output, shape index: {}]
  %s3 = sld [smem:[#allocation0]]
  $region34: #{tpu_custom_call.1} parent=0
    _
  %s5 = ssub.s32 1, %s3
  %s6 = scalar_select 0, %s5, %s3
  $region1: #{tpu_custom_call.1} parent=0
    #allocation3 [shape = 'u8[8192]{0}', space=vmem, size = 0x2000, scoped, tag = 'input window, operand 0, single buffered']
    #allocation4 [shape = 's32[1]{0}', space=sflag, size = 0x4, scoped, tag = 'scoped memory for tpu_custom_call.1']
    #allocation5 [shape = 's32[1]{0}', space=sflag, size = 0x4, scoped, tag = 'scoped memory for tpu_custom_call.1']
    #allocation6 [shape = 'u8[65536]{0}', space=vmem, size = 0x10000, scoped, tag = 'input window, operand 1, single buffered']
    #allocation7 [shape = 's32[1]{0}', space=sflag, size = 0x4, scoped, tag = 'scoped memory for tpu_custom_call.1']
    #allocation8 [shape = 'u8[1024]{0}', space=vmem, size = 0x400, scoped, tag = 'output window, operand 0, single buffered']
    %7 = vsyncpa [#allocation4], 0
    %8 = vsyncpa [#allocation7], 0
    %9 = vsyncpa [#allocation5], 0
    // Predicated region
    $region2: #{tpu_custom_call.1} parent=1 // pred_check
      _
    $region3: #{tpu_custom_call.1} parent=1 // pred_check_branch
      %11 = sbr.rel (0) target = $region5
    $region4: #{tpu_custom_call.1} parent=1 // pred_region
      %s13 = ssub.s32 256, 256
      %14 = vsyncadd [#allocation4], %s13
      %s15 = sshll.u32 [#allocation3], 4
      %s16 = int_to_ptr.vmem [resolvable:$true] %s15
      %21 = dma.hbm_to_vmem [thread:$0]  %s0, 256, %s16, [#allocation4], 32, 32, 2
    $region5: #{tpu_custom_call.1} parent=1 // pred_fallthru
      _
    // Predicated region
    $region6: #{tpu_custom_call.1} parent=1 // pred_check
      _
    $region7: #{tpu_custom_call.1} parent=1 // pred_check_branch
      %23 = sbr.rel (0) target = $region9
    $region8: #{tpu_custom_call.1} parent=1 // pred_region
      %s25 = ssub.s32 2048, 2048
      %26 = vsyncadd [#allocation7], %s25
      %s27 = sshll.u32 [#allocation6], 4
      %s28 = int_to_ptr.vmem [resolvable:$true] %s27
      %33 = dma.hbm_to_vmem [thread:$0]  %s1, 2048, %s28, [#allocation7], 128, 128, 8
    $region9: #{tpu_custom_call.1} parent=1 // pred_fallthru
      _
    // Predicated region
    $region10: #{tpu_custom_call.1} parent=1 // pred_check
      _
    $region11: #{tpu_custom_call.1} parent=1 // pred_check_branch
      %35 = sbr.rel (0) target = $region13
    $region12: #{tpu_custom_call.1} parent=1 // pred_region
      %36 = dma.done [#allocation4], 256
    $region13: #{tpu_custom_call.1} parent=1 // pred_fallthru
      _
    // Predicated region
    $region14: #{tpu_custom_call.1} parent=1 // pred_check
      _
    $region15: #{tpu_custom_call.1} parent=1 // pred_check_branch
      %38 = sbr.rel (0) target = $region17
    $region16: #{tpu_custom_call.1} parent=1 // pred_region
      %39 = dma.done [#allocation7], 2048
    $region17: #{tpu_custom_call.1} parent=1 // pred_fallthru
      _
    %p40 = scmp.eq.s32.totalorder 0, 0
    // Predicated region
    $region18: #{tpu_custom_call.1} parent=1 // pred_check
      %p41 = pneg %p40
    $region19: #{tpu_custom_call.1} parent=1 // pred_check_branch
      %43 = sbr.rel (%p41) target = $region21
    $region20: #{tpu_custom_call.1} parent=1 // pred_region
      %44 = vst [vmem:[#allocation2] sm:$0x3] 0.0
    $region21: #{tpu_custom_call.1} parent=1 // pred_fallthru
      _
    %v45 = vld [vmem:[#allocation6] sm:$0xff]
    %v46 = vld [vmem:[#allocation6 + $0x8] sm:$0xff]
    %v47 = vld [vmem:[#allocation6 + $0x10] sm:$0xff]
    %v48 = vld [vmem:[#allocation6 + $0x18] sm:$0xff]
    %v49 = vld [vmem:[#allocation6 + $0x20] sm:$0xff]
    %v50 = vld [vmem:[#allocation6 + $0x28] sm:$0xff]
    %v51 = vld [vmem:[#allocation6 + $0x30] sm:$0xff]
    %v52 = vld [vmem:[#allocation6 + $0x38] sm:$0xff]
    %v53 = vld [vmem:[#allocation6 + $0x40] sm:$0xff]
    %v54 = vld [vmem:[#allocation6 + $0x48] sm:$0xff]
    %v55 = vld [vmem:[#allocation6 + $0x50] sm:$0xff]
    %v56 = vld [vmem:[#allocation6 + $0x58] sm:$0xff]
    %v57 = vld [vmem:[#allocation6 + $0x60] sm:$0xff]
    %v58 = vld [vmem:[#allocation6 + $0x68] sm:$0xff]
    %v59 = vld [vmem:[#allocation6 + $0x70] sm:$0xff]
    %v60 = vld [vmem:[#allocation6 + $0x78] sm:$0xff]
    %v61 = vld [vmem:[#allocation2] sm:$0x3]
    %v62 = vld [vmem:[#allocation3] sm:$0x3]
    %63 = vmatprep.subr.mxu0 0.0
    %64 = vmatpush1.msra.mxu0 %v60
    %65 = vmatprep.subr.mxu0 0.0
    %66 = vmatpush1.msra.mxu0 %v59
    %67 = vmatprep.subr.mxu0 0.0
    %68 = vmatpush1.msra.mxu0 %v58
    %69 = vmatprep.subr.mxu0 0.0
    %70 = vmatpush1.msra.mxu0 %v57
    %71 = vmatprep.subr.mxu0 0.0
    %72 = vmatpush1.msra.mxu0 %v56
    %73 = vmatprep.subr.mxu0 0.0
    %74 = vmatpush1.msra.mxu0 %v55
    %75 = vmatprep.subr.mxu0 0.0
    %76 = vmatpush1.msra.mxu0 %v54
    %77 = vmatprep.subr.mxu0 0.0
    %78 = vmatpush1.msra.mxu0 %v53
    %79 = vmatprep.subr.mxu0 0.0
    %80 = vmatpush1.msra.mxu0 %v52
    %81 = vmatprep.subr.mxu0 0.0
    %82 = vmatpush1.msra.mxu0 %v51
    %83 = vmatprep.subr.mxu0 0.0
    %84 = vmatpush1.msra.mxu0 %v50
    %85 = vmatprep.subr.mxu0 0.0
    %86 = vmatpush1.msra.mxu0 %v49
    %87 = vmatprep.subr.mxu0 0.0
    %88 = vmatpush1.msra.mxu0 %v48
    %89 = vmatprep.subr.mxu0 0.0
    %90 = vmatpush1.msra.mxu0 %v47
    %91 = vmatprep.subr.mxu0 0.0
    %92 = vmatpush1.msra.mxu0 %v46
    %93 = vmatprep.subr.mxu0 0.0
    %94 = vmatpush1.msra.mxu0 %v45
    %95 = vmatprep.subr.mxu0 0.0
    %96 = vmatpush2.msra.mxu0 0.0
    %97 = vmatprep.subr.mxu0 0.0
    %98 = vmatpush2.msra.mxu0 0.0
    %99 = vmatprep.subr.mxu0 0.0
    %100 = vmatpush2.msra.mxu0 0.0
    %101 = vmatprep.subr.mxu0 0.0
    %102 = vmatpush2.msra.mxu0 0.0
    %103 = vmatprep.subr.mxu0 0.0
    %104 = vmatpush2.msra.mxu0 0.0
    %105 = vmatprep.subr.mxu0 0.0
    %106 = vmatpush2.msra.mxu0 0.0
    %107 = vmatprep.subr.mxu0 0.0
    %108 = vmatpush2.msra.mxu0 0.0
    %109 = vmatprep.subr.mxu0 0.0
    %110 = vmatpush2.msra.mxu0 0.0
    %111 = vmatprep.subr.mxu0 0.0
    %112 = vmatpush2.msra.mxu0 0.0
    %113 = vmatprep.subr.mxu0 0.0
    %114 = vmatpush2.msra.mxu0 0.0
    %115 = vmatprep.subr.mxu0 0.0
    %116 = vmatpush2.msra.mxu0 0.0
    %117 = vmatprep.subr.mxu0 0.0
    %118 = vmatpush2.msra.mxu0 0.0
    %119 = vmatprep.subr.mxu0 0.0
    %120 = vmatpush2.msra.mxu0 0.0
    %121 = vmatprep.subr.mxu0 0.0
    %122 = vmatpush2.msra.mxu0 0.0
    %123 = vmatprep.subr.mxu0 0.0
    %124 = vmatpush2.msra.mxu0 0.0
    %125 = vmatprep.subr.mxu0 0.0
    %126 = vmatpush2.msra.mxu0 0.0
    %127 = vmatprep.mubr.f32.mxu0 0.0
    %128 = vmatmul.mubr.f32.gmra.mxu0 %v61
    %v129 = vpop.f32.mrf.mxu0
    %v130 = vadd.f32 0.0, %v129
    %v131 = vpop.f32.mrf.mxu0
    %132 = vdwg.mxu0
    %v133 = vadd.f32 %v62, %v130
    %v134 = vtanh.pop %v133
    %s135 = scalar_lea.vmem [#allocation3], 2
    %v136 = vld [vmem:[%s135] sm:$0x3]
    %137 = vmatprep.subr.mxu0 0.0
    %138 = vmatpush1.msra.mxu0 %v60
    %139 = vmatprep.subr.mxu0 0.0
    %140 = vmatpush1.msra.mxu0 %v59
    %141 = vmatprep.subr.mxu0 0.0
    %142 = vmatpush1.msra.mxu0 %v58
    %143 = vmatprep.subr.mxu0 0.0
    %144 = vmatpush1.msra.mxu0 %v57
    %145 = vmatprep.subr.mxu0 0.0
    %146 = vmatpush1.msra.mxu0 %v56
    %147 = vmatprep.subr.mxu0 0.0
    %148 = vmatpush1.msra.mxu0 %v55
    %149 = vmatprep.subr.mxu0 0.0
    %150 = vmatpush1.msra.mxu0 %v54
    %151 = vmatprep.subr.mxu0 0.0
    %152 = vmatpush1.msra.mxu0 %v53
    %153 = vmatprep.subr.mxu0 0.0
    %154 = vmatpush1.msra.mxu0 %v52
    %155 = vmatprep.subr.mxu0 0.0
    %156 = vmatpush1.msra.mxu0 %v51
    %157 = vmatprep.subr.mxu0 0.0
    %158 = vmatpush1.msra.mxu0 %v50
    %159 = vmatprep.subr.mxu0 0.0
    %160 = vmatpush1.msra.mxu0 %v49
    %161 = vmatprep.subr.mxu0 0.0
    %162 = vmatpush1.msra.mxu0 %v48
    %163 = vmatprep.subr.mxu0 0.0
    %164 = vmatpush1.msra.mxu0 %v47
    %165 = vmatprep.subr.mxu0 0.0
    %166 = vmatpush1.msra.mxu0 %v46
    %167 = vmatprep.subr.mxu0 0.0
    %168 = vmatpush1.msra.mxu0 %v45
    %169 = vmatprep.subr.mxu0 0.0
    %170 = vmatpush2.msra.mxu0 0.0
    %171 = vmatprep.subr.mxu0 0.0
    %172 = vmatpush2.msra.mxu0 0.0
    %173 = vmatprep.subr.mxu0 0.0
    %174 = vmatpush2.msra.mxu0 0.0
    %175 = vmatprep.subr.mxu0 0.0
    %176 = vmatpush2.msra.mxu0 0.0
    %177 = vmatprep.subr.mxu0 0.0
    %178 = vmatpush2.msra.mxu0 0.0
    %179 = vmatprep.subr.mxu0 0.0
    %180 = vmatpush2.msra.mxu0 0.0
    %181 = vmatprep.subr.mxu0 0.0
    %182 = vmatpush2.msra.mxu0 0.0
    %183 = vmatprep.subr.mxu0 0.0
    %184 = vmatpush2.msra.mxu0 0.0
    %185 = vmatprep.subr.mxu0 0.0
    %186 = vmatpush2.msra.mxu0 0.0
    %187 = vmatprep.subr.mxu0 0.0
    %188 = vmatpush2.msra.mxu0 0.0
    %189 = vmatprep.subr.mxu0 0.0
    %190 = vmatpush2.msra.mxu0 0.0
    %191 = vmatprep.subr.mxu0 0.0
    %192 = vmatpush2.msra.mxu0 0.0
    %193 = vmatprep.subr.mxu0 0.0
    %194 = vmatpush2.msra.mxu0 0.0
    %195 = vmatprep.subr.mxu0 0.0
    %196 = vmatpush2.msra.mxu0 0.0
    %197 = vmatprep.subr.mxu0 0.0
    %198 = vmatpush2.msra.mxu0 0.0
    %199 = vmatprep.subr.mxu0 0.0
    %200 = vmatpush2.msra.mxu0 0.0
    %201 = vmatprep.mubr.f32.mxu0 0.0
    %202 = vmatmul.mubr.f32.gmra.mxu0 %v134
    %v203 = vpop.f32.mrf.mxu0
    %v204 = vadd.f32 0.0, %v203
    %v205 = vpop.f32.mrf.mxu0
    %206 = vdwg.mxu0
    %v207 = vadd.f32 %v136, %v204
    %v208 = vtanh.pop %v207
    %s209 = scalar_lea.vmem [#allocation3], 4
    %v210 = vld [vmem:[%s209] sm:$0x3]
    %211 = vmatprep.subr.mxu0 0.0
    %212 = vmatpush1.msra.mxu0 %v60
    %213 = vmatprep.subr.mxu0 0.0
    %214 = vmatpush1.msra.mxu0 %v59
    %215 = vmatprep.subr.mxu0 0.0
    %216 = vmatpush1.msra.mxu0 %v58
    %217 = vmatprep.subr.mxu0 0.0
    %218 = vmatpush1.msra.mxu0 %v57
    %219 = vmatprep.subr.mxu0 0.0
    %220 = vmatpush1.msra.mxu0 %v56
    %221 = vmatprep.subr.mxu0 0.0
    %222 = vmatpush1.msra.mxu0 %v55
    %223 = vmatprep.subr.mxu0 0.0
    %224 = vmatpush1.msra.mxu0 %v54
    %225 = vmatprep.subr.mxu0 0.0
    %226 = vmatpush1.msra.mxu0 %v53
    %227 = vmatprep.subr.mxu0 0.0
    %228 = vmatpush1.msra.mxu0 %v52
    %229 = vmatprep.subr.mxu0 0.0
    %230 = vmatpush1.msra.mxu0 %v51
    %231 = vmatprep.subr.mxu0 0.0
    %232 = vmatpush1.msra.mxu0 %v50
    %233 = vmatprep.subr.mxu0 0.0
    %234 = vmatpush1.msra.mxu0 %v49
    %235 = vmatprep.subr.mxu0 0.0
    %236 = vmatpush1.msra.mxu0 %v48
    %237 = vmatprep.subr.mxu0 0.0
    %238 = vmatpush1.msra.mxu0 %v47
    %239 = vmatprep.subr.mxu0 0.0
    %240 = vmatpush1.msra.mxu0 %v46
    %241 = vmatprep.subr.mxu0 0.0
    %242 = vmatpush1.msra.mxu0 %v45
    %243 = vmatprep.subr.mxu0 0.0
    %244 = vmatpush2.msra.mxu0 0.0
    %245 = vmatprep.subr.mxu0 0.0
    %246 = vmatpush2.msra.mxu0 0.0
    %247 = vmatprep.subr.mxu0 0.0
    %248 = vmatpush2.msra.mxu0 0.0
    %249 = vmatprep.subr.mxu0 0.0
    %250 = vmatpush2.msra.mxu0 0.0
    %251 = vmatprep.subr.mxu0 0.0
    %252 = vmatpush2.msra.mxu0 0.0
    %253 = vmatprep.subr.mxu0 0.0
    %254 = vmatpush2.msra.mxu0 0.0
    %255 = vmatprep.subr.mxu0 0.0
    %256 = vmatpush2.msra.mxu0 0.0
    %257 = vmatprep.subr.mxu0 0.0
    %258 = vmatpush2.msra.mxu0 0.0
    %259 = vmatprep.subr.mxu0 0.0
    %260 = vmatpush2.msra.mxu0 0.0
    %261 = vmatprep.subr.mxu0 0.0
    %262 = vmatpush2.msra.mxu0 0.0
    %263 = vmatprep.subr.mxu0 0.0
    %264 = vmatpush2.msra.mxu0 0.0
    %265 = vmatprep.subr.mxu0 0.0
    %266 = vmatpush2.msra.mxu0 0.0
    %267 = vmatprep.subr.mxu0 0.0
    %268 = vmatpush2.msra.mxu0 0.0
    %269 = vmatprep.subr.mxu0 0.0
    %270 = vmatpush2.msra.mxu0 0.0
    %271 = vmatprep.subr.mxu0 0.0
    %272 = vmatpush2.msra.mxu0 0.0
    %273 = vmatprep.subr.mxu0 0.0
    %274 = vmatpush2.msra.mxu0 0.0
    %275 = vmatprep.mubr.f32.mxu0 0.0
    %276 = vmatmul.mubr.f32.gmra.mxu0 %v208
    %v277 = vpop.f32.mrf.mxu0
    %v278 = vadd.f32 0.0, %v277
    %v279 = vpop.f32.mrf.mxu0
    %280 = vdwg.mxu0
    %v281 = vadd.f32 %v210, %v278
    %v282 = vtanh.pop %v281
    %s283 = scalar_lea.vmem [#allocation3], 6
    %v284 = vld [vmem:[%s283] sm:$0x3]
    %285 = vmatprep.subr.mxu0 0.0
    %286 = vmatpush1.msra.mxu0 %v60
    %287 = vmatprep.subr.mxu0 0.0
    %288 = vmatpush1.msra.mxu0 %v59
    %289 = vmatprep.subr.mxu0 0.0
    %290 = vmatpush1.msra.mxu0 %v58
    %291 = vmatprep.subr.mxu0 0.0
    %292 = vmatpush1.msra.mxu0 %v57
    %293 = vmatprep.subr.mxu0 0.0
    %294 = vmatpush1.msra.mxu0 %v56
    %295 = vmatprep.subr.mxu0 0.0
    %296 = vmatpush1.msra.mxu0 %v55
    %297 = vmatprep.subr.mxu0 0.0
    %298 = vmatpush1.msra.mxu0 %v54
    %299 = vmatprep.subr.mxu0 0.0
    %300 = vmatpush1.msra.mxu0 %v53
    %301 = vmatprep.subr.mxu0 0.0
    %302 = vmatpush1.msra.mxu0 %v52
    %303 = vmatprep.subr.mxu0 0.0
    %304 = vmatpush1.msra.mxu0 %v51
    %305 = vmatprep.subr.mxu0 0.0
    %306 = vmatpush1.msra.mxu0 %v50
    %307 = vmatprep.subr.mxu0 0.0
    %308 = vmatpush1.msra.mxu0 %v49
    %309 = vmatprep.subr.mxu0 0.0
    %310 = vmatpush1.msra.mxu0 %v48
    %311 = vmatprep.subr.mxu0 0.0
    %312 = vmatpush1.msra.mxu0 %v47
    %313 = vmatprep.subr.mxu0 0.0
    %314 = vmatpush1.msra.mxu0 %v46
    %315 = vmatprep.subr.mxu0 0.0
    %316 = vmatpush1.msra.mxu0 %v45
    %317 = vmatprep.subr.mxu0 0.0
    %318 = vmatpush2.msra.mxu0 0.0
    %319 = vmatprep.subr.mxu0 0.0
    %320 = vmatpush2.msra.mxu0 0.0
    %321 = vmatprep.subr.mxu0 0.0
    %322 = vmatpush2.msra.mxu0 0.0
    %323 = vmatprep.subr.mxu0 0.0
    %324 = vmatpush2.msra.mxu0 0.0
    %325 = vmatprep.subr.mxu0 0.0
    %326 = vmatpush2.msra.mxu0 0.0
    %327 = vmatprep.subr.mxu0 0.0
    %328 = vmatpush2.msra.mxu0 0.0
    %329 = vmatprep.subr.mxu0 0.0
    %330 = vmatpush2.msra.mxu0 0.0
    %331 = vmatprep.subr.mxu0 0.0
    %332 = vmatpush2.msra.mxu0 0.0
    %333 = vmatprep.subr.mxu0 0.0
    %334 = vmatpush2.msra.mxu0 0.0
    %335 = vmatprep.subr.mxu0 0.0
    %336 = vmatpush2.msra.mxu0 0.0
    %337 = vmatprep.subr.mxu0 0.0
    %338 = vmatpush2.msra.mxu0 0.0
    %339 = vmatprep.subr.mxu0 0.0
    %340 = vmatpush2.msra.mxu0 0.0
    %341 = vmatprep.subr.mxu0 0.0
    %342 = vmatpush2.msra.mxu0 0.0
    %343 = vmatprep.subr.mxu0 0.0
    %344 = vmatpush2.msra.mxu0 0.0
    %345 = vmatprep.subr.mxu0 0.0
    %346 = vmatpush2.msra.mxu0 0.0
    %347 = vmatprep.subr.mxu0 0.0
    %348 = vmatpush2.msra.mxu0 0.0
    %349 = vmatprep.mubr.f32.mxu0 0.0
    %350 = vmatmul.mubr.f32.gmra.mxu0 %v282
    %v351 = vpop.f32.mrf.mxu0
    %v352 = vadd.f32 0.0, %v351
    %v353 = vpop.f32.mrf.mxu0
    %354 = vdwg.mxu0
    %v355 = vadd.f32 %v284, %v352
    %v356 = vtanh.pop %v355
    %s357 = scalar_lea.vmem [#allocation3], 8
    %v358 = vld [vmem:[%s357] sm:$0x3]
    %359 = vmatprep.subr.mxu0 0.0
    %360 = vmatpush1.msra.mxu0 %v60
    %361 = vmatprep.subr.mxu0 0.0
    %362 = vmatpush1.msra.mxu0 %v59
    %363 = vmatprep.subr.mxu0 0.0
    %364 = vmatpush1.msra.mxu0 %v58
    %365 = vmatprep.subr.mxu0 0.0
    %366 = vmatpush1.msra.mxu0 %v57
    %367 = vmatprep.subr.mxu0 0.0
    %368 = vmatpush1.msra.mxu0 %v56
    %369 = vmatprep.subr.mxu0 0.0
    %370 = vmatpush1.msra.mxu0 %v55
    %371 = vmatprep.subr.mxu0 0.0
    %372 = vmatpush1.msra.mxu0 %v54
    %373 = vmatprep.subr.mxu0 0.0
    %374 = vmatpush1.msra.mxu0 %v53
    %375 = vmatprep.subr.mxu0 0.0
    %376 = vmatpush1.msra.mxu0 %v52
    %377 = vmatprep.subr.mxu0 0.0
    %378 = vmatpush1.msra.mxu0 %v51
    %379 = vmatprep.subr.mxu0 0.0
    %380 = vmatpush1.msra.mxu0 %v50
    %381 = vmatprep.subr.mxu0 0.0
    %382 = vmatpush1.msra.mxu0 %v49
    %383 = vmatprep.subr.mxu0 0.0
    %384 = vmatpush1.msra.mxu0 %v48
    %385 = vmatprep.subr.mxu0 0.0
    %386 = vmatpush1.msra.mxu0 %v47
    %387 = vmatprep.subr.mxu0 0.0
    %388 = vmatpush1.msra.mxu0 %v46
    %389 = vmatprep.subr.mxu0 0.0
    %390 = vmatpush1.msra.mxu0 %v45
    %391 = vmatprep.subr.mxu0 0.0
    %392 = vmatpush2.msra.mxu0 0.0
    %393 = vmatprep.subr.mxu0 0.0
    %394 = vmatpush2.msra.mxu0 0.0
    %395 = vmatprep.subr.mxu0 0.0
    %396 = vmatpush2.msra.mxu0 0.0
    %397 = vmatprep.subr.mxu0 0.0
    %398 = vmatpush2.msra.mxu0 0.0
    %399 = vmatprep.subr.mxu0 0.0
    %400 = vmatpush2.msra.mxu0 0.0
    %401 = vmatprep.subr.mxu0 0.0
    %402 = vmatpush2.msra.mxu0 0.0
    %403 = vmatprep.subr.mxu0 0.0
    %404 = vmatpush2.msra.mxu0 0.0
    %405 = vmatprep.subr.mxu0 0.0
    %406 = vmatpush2.msra.mxu0 0.0
    %407 = vmatprep.subr.mxu0 0.0
    %408 = vmatpush2.msra.mxu0 0.0
    %409 = vmatprep.subr.mxu0 0.0
    %410 = vmatpush2.msra.mxu0 0.0
    %411 = vmatprep.subr.mxu0 0.0
    %412 = vmatpush2.msra.mxu0 0.0
    %413 = vmatprep.subr.mxu0 0.0
    %414 = vmatpush2.msra.mxu0 0.0
    %415 = vmatprep.subr.mxu0 0.0
    %416 = vmatpush2.msra.mxu0 0.0
    %417 = vmatprep.subr.mxu0 0.0
    %418 = vmatpush2.msra.mxu0 0.0
    %419 = vmatprep.subr.mxu0 0.0
    %420 = vmatpush2.msra.mxu0 0.0
    %421 = vmatprep.subr.mxu0 0.0
    %422 = vmatpush2.msra.mxu0 0.0
    %423 = vmatprep.mubr.f32.mxu0 0.0
    %424 = vmatmul.mubr.f32.gmra.mxu0 %v356
    %v425 = vpop.f32.mrf.mxu0
    %v426 = vadd.f32 0.0, %v425
    %v427 = vpop.f32.mrf.mxu0
    %428 = vdwg.mxu0
    %v429 = vadd.f32 %v358, %v426
    %v430 = vtanh.pop %v429
    %s431 = scalar_lea.vmem [#allocation3], 10
    %v432 = vld [vmem:[%s431] sm:$0x3]
    %433 = vmatprep.subr.mxu0 0.0
    %434 = vmatpush1.msra.mxu0 %v60
    %435 = vmatprep.subr.mxu0 0.0
    %436 = vmatpush1.msra.mxu0 %v59
    %437 = vmatprep.subr.mxu0 0.0
    %438 = vmatpush1.msra.mxu0 %v58
    %439 = vmatprep.subr.mxu0 0.0
    %440 = vmatpush1.msra.mxu0 %v57
    %441 = vmatprep.subr.mxu0 0.0
    %442 = vmatpush1.msra.mxu0 %v56
    %443 = vmatprep.subr.mxu0 0.0
    %444 = vmatpush1.msra.mxu0 %v55
    %445 = vmatprep.subr.mxu0 0.0
    %446 = vmatpush1.msra.mxu0 %v54
    %447 = vmatprep.subr.mxu0 0.0
    %448 = vmatpush1.msra.mxu0 %v53
    %449 = vmatprep.subr.mxu0 0.0
    %450 = vmatpush1.msra.mxu0 %v52
    %451 = vmatprep.subr.mxu0 0.0
    %452 = vmatpush1.msra.mxu0 %v51
    %453 = vmatprep.subr.mxu0 0.0
    %454 = vmatpush1.msra.mxu0 %v50
    %455 = vmatprep.subr.mxu0 0.0
    %456 = vmatpush1.msra.mxu0 %v49
    %457 = vmatprep.subr.mxu0 0.0
    %458 = vmatpush1.msra.mxu0 %v48
    %459 = vmatprep.subr.mxu0 0.0
    %460 = vmatpush1.msra.mxu0 %v47
    %461 = vmatprep.subr.mxu0 0.0
    %462 = vmatpush1.msra.mxu0 %v46
    %463 = vmatprep.subr.mxu0 0.0
    %464 = vmatpush1.msra.mxu0 %v45
    %465 = vmatprep.subr.mxu0 0.0
    %466 = vmatpush2.msra.mxu0 0.0
    %467 = vmatprep.subr.mxu0 0.0
    %468 = vmatpush2.msra.mxu0 0.0
    %469 = vmatprep.subr.mxu0 0.0
    %470 = vmatpush2.msra.mxu0 0.0
    %471 = vmatprep.subr.mxu0 0.0
    %472 = vmatpush2.msra.mxu0 0.0
    %473 = vmatprep.subr.mxu0 0.0
    %474 = vmatpush2.msra.mxu0 0.0
    %475 = vmatprep.subr.mxu0 0.0
    %476 = vmatpush2.msra.mxu0 0.0
    %477 = vmatprep.subr.mxu0 0.0
    %478 = vmatpush2.msra.mxu0 0.0
    %479 = vmatprep.subr.mxu0 0.0
    %480 = vmatpush2.msra.mxu0 0.0
    %481 = vmatprep.subr.mxu0 0.0
    %482 = vmatpush2.msra.mxu0 0.0
    %483 = vmatprep.subr.mxu0 0.0
    %484 = vmatpush2.msra.mxu0 0.0
    %485 = vmatprep.subr.mxu0 0.0
    %486 = vmatpush2.msra.mxu0 0.0
    %487 = vmatprep.subr.mxu0 0.0
    %488 = vmatpush2.msra.mxu0 0.0
    %489 = vmatprep.subr.mxu0 0.0
    %490 = vmatpush2.msra.mxu0 0.0
    %491 = vmatprep.subr.mxu0 0.0
    %492 = vmatpush2.msra.mxu0 0.0
    %493 = vmatprep.subr.mxu0 0.0
    %494 = vmatpush2.msra.mxu0 0.0
    %495 = vmatprep.subr.mxu0 0.0
    %496 = vmatpush2.msra.mxu0 0.0
    %497 = vmatprep.mubr.f32.mxu0 0.0
    %498 = vmatmul.mubr.f32.gmra.mxu0 %v430
    %v499 = vpop.f32.mrf.mxu0
    %v500 = vadd.f32 0.0, %v499
    %v501 = vpop.f32.mrf.mxu0
    %502 = vdwg.mxu0
    %v503 = vadd.f32 %v432, %v500
    %v504 = vtanh.pop %v503
    %s505 = scalar_lea.vmem [#allocation3], 12
    %v506 = vld [vmem:[%s505] sm:$0x3]
    %507 = vmatprep.subr.mxu0 0.0
    %508 = vmatpush1.msra.mxu0 %v60
    %509 = vmatprep.subr.mxu0 0.0
    %510 = vmatpush1.msra.mxu0 %v59
    %511 = vmatprep.subr.mxu0 0.0
    %512 = vmatpush1.msra.mxu0 %v58
    %513 = vmatprep.subr.mxu0 0.0
    %514 = vmatpush1.msra.mxu0 %v57
    %515 = vmatprep.subr.mxu0 0.0
    %516 = vmatpush1.msra.mxu0 %v56
    %517 = vmatprep.subr.mxu0 0.0
    %518 = vmatpush1.msra.mxu0 %v55
    %519 = vmatprep.subr.mxu0 0.0
    %520 = vmatpush1.msra.mxu0 %v54
    %521 = vmatprep.subr.mxu0 0.0
    %522 = vmatpush1.msra.mxu0 %v53
    %523 = vmatprep.subr.mxu0 0.0
    %524 = vmatpush1.msra.mxu0 %v52
    %525 = vmatprep.subr.mxu0 0.0
    %526 = vmatpush1.msra.mxu0 %v51
    %527 = vmatprep.subr.mxu0 0.0
    %528 = vmatpush1.msra.mxu0 %v50
    %529 = vmatprep.subr.mxu0 0.0
    %530 = vmatpush1.msra.mxu0 %v49
    %531 = vmatprep.subr.mxu0 0.0
    %532 = vmatpush1.msra.mxu0 %v48
    %533 = vmatprep.subr.mxu0 0.0
    %534 = vmatpush1.msra.mxu0 %v47
    %535 = vmatprep.subr.mxu0 0.0
    %536 = vmatpush1.msra.mxu0 %v46
    %537 = vmatprep.subr.mxu0 0.0
    %538 = vmatpush1.msra.mxu0 %v45
    %539 = vmatprep.subr.mxu0 0.0
    %540 = vmatpush2.msra.mxu0 0.0
    %541 = vmatprep.subr.mxu0 0.0
    %542 = vmatpush2.msra.mxu0 0.0
    %543 = vmatprep.subr.mxu0 0.0
    %544 = vmatpush2.msra.mxu0 0.0
    %545 = vmatprep.subr.mxu0 0.0
    %546 = vmatpush2.msra.mxu0 0.0
    %547 = vmatprep.subr.mxu0 0.0
    %548 = vmatpush2.msra.mxu0 0.0
    %549 = vmatprep.subr.mxu0 0.0
    %550 = vmatpush2.msra.mxu0 0.0
    %551 = vmatprep.subr.mxu0 0.0
    %552 = vmatpush2.msra.mxu0 0.0
    %553 = vmatprep.subr.mxu0 0.0
    %554 = vmatpush2.msra.mxu0 0.0
    %555 = vmatprep.subr.mxu0 0.0
    %556 = vmatpush2.msra.mxu0 0.0
    %557 = vmatprep.subr.mxu0 0.0
    %558 = vmatpush2.msra.mxu0 0.0
    %559 = vmatprep.subr.mxu0 0.0
    %560 = vmatpush2.msra.mxu0 0.0
    %561 = vmatprep.subr.mxu0 0.0
    %562 = vmatpush2.msra.mxu0 0.0
    %563 = vmatprep.subr.mxu0 0.0
    %564 = vmatpush2.msra.mxu0 0.0
    %565 = vmatprep.subr.mxu0 0.0
    %566 = vmatpush2.msra.mxu0 0.0
    %567 = vmatprep.subr.mxu0 0.0
    %568 = vmatpush2.msra.mxu0 0.0
    %569 = vmatprep.subr.mxu0 0.0
    %570 = vmatpush2.msra.mxu0 0.0
    %571 = vmatprep.mubr.f32.mxu0 0.0
    %572 = vmatmul.mubr.f32.gmra.mxu0 %v504
    %v573 = vpop.f32.mrf.mxu0
    %v574 = vadd.f32 0.0, %v573
    %v575 = vpop.f32.mrf.mxu0
    %576 = vdwg.mxu0
    %v577 = vadd.f32 %v506, %v574
    %v578 = vtanh.pop %v577
    %s579 = scalar_lea.vmem [#allocation3], 14
    %v580 = vld [vmem:[%s579] sm:$0x3]
    %581 = vmatprep.subr.mxu0 0.0
    %582 = vmatpush1.msra.mxu0 %v60
    %583 = vmatprep.subr.mxu0 0.0
    %584 = vmatpush1.msra.mxu0 %v59
    %585 = vmatprep.subr.mxu0 0.0
    %586 = vmatpush1.msra.mxu0 %v58
    %587 = vmatprep.subr.mxu0 0.0
    %588 = vmatpush1.msra.mxu0 %v57
    %589 = vmatprep.subr.mxu0 0.0
    %590 = vmatpush1.msra.mxu0 %v56
    %591 = vmatprep.subr.mxu0 0.0
    %592 = vmatpush1.msra.mxu0 %v55
    %593 = vmatprep.subr.mxu0 0.0
    %594 = vmatpush1.msra.mxu0 %v54
    %595 = vmatprep.subr.mxu0 0.0
    %596 = vmatpush1.msra.mxu0 %v53
    %597 = vmatprep.subr.mxu0 0.0
    %598 = vmatpush1.msra.mxu0 %v52
    %599 = vmatprep.subr.mxu0 0.0
    %600 = vmatpush1.msra.mxu0 %v51
    %601 = vmatprep.subr.mxu0 0.0
    %602 = vmatpush1.msra.mxu0 %v50
    %603 = vmatprep.subr.mxu0 0.0
    %604 = vmatpush1.msra.mxu0 %v49
    %605 = vmatprep.subr.mxu0 0.0
    %606 = vmatpush1.msra.mxu0 %v48
    %607 = vmatprep.subr.mxu0 0.0
    %608 = vmatpush1.msra.mxu0 %v47
    %609 = vmatprep.subr.mxu0 0.0
    %610 = vmatpush1.msra.mxu0 %v46
    %611 = vmatprep.subr.mxu0 0.0
    %612 = vmatpush1.msra.mxu0 %v45
    %613 = vmatprep.subr.mxu0 0.0
    %614 = vmatpush2.msra.mxu0 0.0
    %615 = vmatprep.subr.mxu0 0.0
    %616 = vmatpush2.msra.mxu0 0.0
    %617 = vmatprep.subr.mxu0 0.0
    %618 = vmatpush2.msra.mxu0 0.0
    %619 = vmatprep.subr.mxu0 0.0
    %620 = vmatpush2.msra.mxu0 0.0
    %621 = vmatprep.subr.mxu0 0.0
    %622 = vmatpush2.msra.mxu0 0.0
    %623 = vmatprep.subr.mxu0 0.0
    %624 = vmatpush2.msra.mxu0 0.0
    %625 = vmatprep.subr.mxu0 0.0
    %626 = vmatpush2.msra.mxu0 0.0
    %627 = vmatprep.subr.mxu0 0.0
    %628 = vmatpush2.msra.mxu0 0.0
    %629 = vmatprep.subr.mxu0 0.0
    %630 = vmatpush2.msra.mxu0 0.0
    %631 = vmatprep.subr.mxu0 0.0
    %632 = vmatpush2.msra.mxu0 0.0
    %633 = vmatprep.subr.mxu0 0.0
    %634 = vmatpush2.msra.mxu0 0.0
    %635 = vmatprep.subr.mxu0 0.0
    %636 = vmatpush2.msra.mxu0 0.0
    %637 = vmatprep.subr.mxu0 0.0
    %638 = vmatpush2.msra.mxu0 0.0
    %639 = vmatprep.subr.mxu0 0.0
    %640 = vmatpush2.msra.mxu0 0.0
    %641 = vmatprep.subr.mxu0 0.0
    %642 = vmatpush2.msra.mxu0 0.0
    %643 = vmatprep.subr.mxu0 0.0
    %644 = vmatpush2.msra.mxu0 0.0
    %645 = vmatprep.mubr.f32.mxu0 0.0
    %646 = vmatmul.mubr.f32.gmra.mxu0 %v578
    %v647 = vpop.f32.mrf.mxu0
    %v648 = vadd.f32 0.0, %v647
    %v649 = vpop.f32.mrf.mxu0
    %650 = vdwg.mxu0
    %v651 = vadd.f32 %v580, %v648
    %v652 = vtanh.pop %v651
    %653 = vst [vmem:[#allocation2] sm:$0x3] %v652
    // Predicated region
    $region22: #{tpu_custom_call.1} parent=1 // pred_check
      %p654 = pneg %p40
    $region23: #{tpu_custom_call.1} parent=1 // pred_check_branch
      %656 = sbr.rel (%p654) target = $region25
    $region24: #{tpu_custom_call.1} parent=1 // pred_region
      %657 = vst [vmem:[#allocation8] sm:$0x3] %v652
    $region25: #{tpu_custom_call.1} parent=1 // pred_fallthru
      _
    // Predicated region
    $region26: #{tpu_custom_call.1} parent=1 // pred_check
      _
    $region27: #{tpu_custom_call.1} parent=1 // pred_check_branch
      %659 = sbr.rel (0) target = $region29
    $region28: #{tpu_custom_call.1} parent=1 // pred_region
      %s661 = ssub.s32 32, 32
      %662 = vsyncadd [#allocation5], %s661
      %s664 = sshll.u32 [#allocation8], 4
      %s665 = int_to_ptr.vmem [resolvable:$true] %s664
      %667 = dma.vmem_to_hbm [thread:$0]  %s665, 32, %s2, [#allocation5]
    $region29: #{tpu_custom_call.1} parent=1 // pred_fallthru
      _
    // Predicated region
    $region30: #{tpu_custom_call.1} parent=1 // pred_check
      _
    $region31: #{tpu_custom_call.1} parent=1 // pred_check_branch
      %669 = sbr.rel (0) target = $region33
    $region32: #{tpu_custom_call.1} parent=1 // pred_region
      %670 = dma.done [#allocation5], 32
    $region33: #{tpu_custom_call.1} parent=1 // pred_fallthru
      _
    %671 = vsyncpa [#allocation4], 1
    %672 = vsyncpa [#allocation7], 1
    %673 = vsyncpa [#allocation5], 1

</llo_original>
